<compile_context>
chip_gen: v5e
topology: v5e:2x2
jax: 0.10.0
libtpu: 0.0.40
codegen_flags: <defaults>
</compile_context>

<pallas_src>
import jax
import jax.numpy as jnp
from jax.experimental import pallas as pl
from jax.experimental.pallas import tpu as pltpu


def _round_up(n, m):
    return ((n + m - 1) // m) * m


def _is_v7x():
    """Best-effort detection of a 2-TensorCore (v7x) chip."""
    try:
        kind = jax.devices()[0].device_kind.lower()
    except Exception:
        return False
    return ("v7" in kind) or ("tpu7" in kind) or kind.strip().endswith("7x")


def _plan_batch(batch, cap, want_multi_step):
    """Pick (batch_tile, padded_batch): tile is a multiple of 8, <= cap, and
    padded_batch % tile == 0.  Prefers exact divisors of `batch` (no extra
    padding pass over x); on v7x prefers >= 2 grid steps so both TensorCores
    get work under dimension_semantics=("parallel",)."""
    for t in range(min(batch, cap), 7, -1):
        if t % 8 == 0 and batch % t == 0:
            if want_multi_step and batch // t < 2 and t > 8:
                continue  # keep looking for a >=2-step divisor (v7x, 2 TCs)
            return t, batch
    # No suitable divisor: pad the batch once up to a multiple of the tile
    # (padded rows are sliced off the output in the wrapper).
    tile = min(cap, _round_up(batch, 8))
    return tile, tile * pl.cdiv(batch, tile)


def mlp_kernel(x_ref, w1_ref, b1_ref, w2_ref, b2_ref, o_ref):
    x = x_ref[...]
    if x.dtype != jnp.bfloat16:
        x = x.astype(jnp.bfloat16)            # f32-input path: cast in-kernel
    # Layer 1 on the MXU: bf16 inputs, f32 accumulate (dominant cost stream).
    h = jnp.dot(x, w1_ref[...], preferred_element_type=jnp.float32)   # (tb, H)
    h = jnp.maximum(h + b1_ref[...], 0.0)                             # bias+ReLU
    # Layer 2 is tiny (H x Dout, Dout=2): exact f32.
    y = jnp.dot(h, w2_ref[...], preferred_element_type=jnp.float32)   # (tb, Dout)
    o_ref[...] = (y + b2_ref[...]).astype(o_ref.dtype)


def prepare_params(w1, b1, w2, b2):
    """One-time weight prep: W1 -> bf16 (resident stream), biases -> (1, n).
    No contraction-dim padding (Din stays 1728)."""
    _, hidden = w1.shape
    dout = w2.shape[1]
    w1 = jnp.asarray(w1, jnp.float32).astype(jnp.bfloat16)   # (Din, H) bf16
    b1 = jnp.asarray(b1, jnp.float32).reshape(1, hidden)
    w2 = jnp.asarray(w2, jnp.float32)                         # (H, Dout) f32
    b2 = jnp.asarray(b2, jnp.float32).reshape(1, dout)
    return w1, b1, w2, b2


def mlp_forward(x, w1, b1, w2, b2, *, batch_tile=None, want_multi_step=None):
    """x: (B, Din) f32 or bf16.  w1: (Din, H) bf16.  Returns (B, Dout) f32."""
    batch, din = x.shape
    din_w, hidden = w1.shape
    dout = w2.shape[1]
    assert din == din_w, "x feature dim must match W1"

    x_is_bf16 = (x.dtype == jnp.bfloat16)
    # Keep a double-buffered x tile comfortably within v5e's 16 MiB scoped
    # VMEM default (f32: 512*1728*4*2 ~= 6.9 MB; bf16: 1024*1728*2*2 ~= 6.9 MB).
    cap = 1024 if x_is_bf16 else 512
    if want_multi_step is None:
        want_multi_step = _is_v7x()

    if batch_tile is None:
        batch_tile, padded_batch = _plan_batch(batch, cap, want_multi_step)
    else:
        padded_batch = batch_tile * pl.cdiv(batch, batch_tile)
    assert batch_tile % 8 == 0
    assert padded_batch % batch_tile == 0

    if padded_batch != batch:
        # One-time row pad (only for awkward batch sizes) so every grid step
        # sees a full multiple-of-8 tile; padded rows are sliced off below.
        x = jnp.pad(x, ((0, padded_batch - batch), (0, 0)))

    grid = (padded_batch // batch_tile,)

    cost = pl.CostEstimate(
        flops=2 * padded_batch * din * hidden + 2 * padded_batch * hidden * dout,
        transcendentals=0,
        bytes_accessed=(
            padded_batch * din * x.dtype.itemsize   # x (dominant at large batch)
            + w1.size * 2                           # W1 (bf16, resident)
            + b1.size * 4 + w2.size * 4 + b2.size * 4
            + padded_batch * dout * 4               # output (f32)
        ),
    )

    resident = pl.Buffered(1)  # constant index_map -> single buffer is enough

    out = pl.pallas_call(
        mlp_kernel,
        out_shape=jax.ShapeDtypeStruct((padded_batch, dout), jnp.float32),
        grid_spec=pltpu.PrefetchScalarGridSpec(
            num_scalar_prefetch=0,
            grid=grid,
            in_specs=[
                pl.BlockSpec((batch_tile, din), lambda i: (i, 0)),     # x tile
                pl.BlockSpec((din, hidden), lambda i: (0, 0),
                             pipeline_mode=resident),                   # W1 (bf16)
                pl.BlockSpec((1, hidden), lambda i: (0, 0),
                             pipeline_mode=resident),                   # b1
                pl.BlockSpec((hidden, dout), lambda i: (0, 0),
                             pipeline_mode=resident),                   # W2
                pl.BlockSpec((1, dout), lambda i: (0, 0),
                             pipeline_mode=resident),                   # b2
            ],
            out_specs=pl.BlockSpec((batch_tile, dout), lambda i: (i, 0)),
        ),
        compiler_params=pltpu.CompilerParams(
            dimension_semantics=("parallel",),
        ),
        cost_estimate=cost,
    )(x, w1, b1, w2, b2)

    return out if padded_batch == batch else out[:batch]


def mlp_reference(x, w1, b1, w2, b2):
    # Reference with the same bf16 quantization of x / W1 (f32 accumulate),
    # exact f32 everywhere else.
    xq = x.astype(jnp.bfloat16).astype(jnp.float32)
    w1q = w1.astype(jnp.bfloat16).astype(jnp.float32)
    h = jnp.dot(xq, w1q, precision=jax.lax.Precision.HIGHEST) + b1
    h = jnp.maximum(h, 0.0)
    return jnp.dot(h, w2, precision=jax.lax.Precision.HIGHEST) + b2


if __name__ == "__main__":
    # Module defaults: in_channels = 64*3*3*3 = 1728, hidden = 128, out = 2.
    IN_FEATURES = 64 * 3 * 3 * 3
    HIDDEN = 128
    OUT = 2
    BATCH = 16

    key = jax.random.PRNGKey(0)
    kx, kw1, kb1, kw2, kb2 = jax.random.split(key, 5)

    x = jax.random.normal(kx, (BATCH, IN_FEATURES), dtype=jnp.float32)

    # Deterministic parameter init (Kaiming-uniform-like scaling, as nn.Linear).
    lim1 = 1.0 / (IN_FEATURES ** 0.5)
    lim2 = 1.0 / (HIDDEN ** 0.5)
    w1 = jax.random.uniform(kw1, (IN_FEATURES, HIDDEN), jnp.float32, -lim1, lim1)
    b1 = jax.random.uniform(kb1, (1, HIDDEN), jnp.float32, -lim1, lim1)
    w2 = jax.random.uniform(kw2, (HIDDEN, OUT), jnp.float32, -lim2, lim2)
    b2 = jax.random.uniform(kb2, (1, OUT), jnp.float32, -lim2, lim2)

    # One-time weight preparation (W1 -> bf16; no Din padding).
    w1_p, b1_p, w2_p, b2_p = prepare_params(w1, b1, w2, b2)

    ref = mlp_reference(x, w1, b1, w2, b2)

    # Path 1: f32 x (cast to bf16 happens in-kernel, no extra wrapper pass).
    out_f32 = jax.block_until_ready(mlp_forward(x, w1_p, b1_p, w2_p, b2_p))
    assert out_f32.shape == (BATCH, OUT) and out_f32.dtype == jnp.float32
    assert jnp.allclose(out_f32, ref, atol=5e-3, rtol=5e-3), "f32-input mismatch"

    # Path 2: bf16 x, simulating a producer that already emits bf16
    # (halves the dominant x HBM stream at large batch).
    x_bf16 = x.astype(jnp.bfloat16)
    out_bf16 = jax.block_until_ready(mlp_forward(x_bf16, w1_p, b1_p, w2_p, b2_p))
    assert out_bf16.shape == (BATCH, OUT) and out_bf16.dtype == jnp.float32
    assert jnp.allclose(out_bf16, ref, atol=5e-3, rtol=5e-3), "bf16-input mismatch"

    print("KERNEL_OK")
</pallas_src>

<mosaic_0001>
module attributes {stable_mosaic.version = 11 : i64} {
  func.func @mlp_kernel(%arg0: i32, %arg1: memref<16x1728xf32, #tpu.memory_space<vmem>>, %arg2: memref<1728x128xbf16, #tpu.memory_space<vmem>>, %arg3: memref<1x128xf32, #tpu.memory_space<vmem>>, %arg4: memref<128x2xf32, #tpu.memory_space<vmem>>, %arg5: memref<1x2xf32, #tpu.memory_space<vmem>>, %arg6: memref<16x2xf32, #tpu.memory_space<vmem>>) attributes {dimension_semantics = [#tpu.dimension_semantics<parallel>], iteration_bounds = array<i64: 1>, scalar_prefetch = 0 : i64, scratch_operands = 0 : i64, tpu.core_type = #tpu.core_type<tc>, window_params = [{transform_indices = @transform_0, window_bounds = array<i64: 16, 1728>}, {pipeline_mode = #tpu.pipeline_mode<synchronous>, transform_indices = @transform_1, window_bounds = array<i64: 1728, 128>}, {pipeline_mode = #tpu.pipeline_mode<synchronous>, transform_indices = @transform_2, window_bounds = array<i64: 1, 128>}, {pipeline_mode = #tpu.pipeline_mode<synchronous>, transform_indices = @transform_3, window_bounds = array<i64: 128, 2>}, {pipeline_mode = #tpu.pipeline_mode<synchronous>, transform_indices = @transform_4, window_bounds = array<i64: 1, 2>}, {transform_indices = @transform_5, window_bounds = array<i64: 16, 2>}]} {
    %c0 = arith.constant 0 : index
    %c0_0 = arith.constant 0 : index
    %0 = vector.load %arg1[%c0, %c0_0] : memref<16x1728xf32, #tpu.memory_space<vmem>>, vector<16x1728xf32>
    %1 = arith.truncf %0 : vector<16x1728xf32> to vector<16x1728xbf16>
    %c0_1 = arith.constant 0 : index
    %c0_2 = arith.constant 0 : index
    %2 = vector.load %arg2[%c0_1, %c0_2] : memref<1728x128xbf16, #tpu.memory_space<vmem>>, vector<1728x128xbf16>
    %cst = arith.constant dense<0.000000e+00> : vector<16x128xf32>
    %3 = tpu.matmul %1, %2, %cst {dimension_numbers = #tpu.dot_dimension_numbers<[1], [0], [0], [1], [0, 0, 1, 1], [], []>} : vector<16x1728xbf16>, vector<1728x128xbf16>, vector<16x128xf32> -> vector<16x128xf32>
    %c0_3 = arith.constant 0 : index
    %c0_4 = arith.constant 0 : index
    %4 = vector.load %arg3[%c0_3, %c0_4] : memref<1x128xf32, #tpu.memory_space<vmem>>, vector<1x128xf32>
    %5 = vector.broadcast %4 : vector<1x128xf32> to vector<16x128xf32>
    %6 = arith.addf %3, %5 : vector<16x128xf32>
    %cst_5 = arith.constant 0.000000e+00 : f32
    %7 = vector.broadcast %cst_5 : f32 to vector<16x128xf32>
    %8 = arith.maximumf %6, %7 : vector<16x128xf32>
    %c0_6 = arith.constant 0 : index
    %c0_7 = arith.constant 0 : index
    %9 = vector.load %arg4[%c0_6, %c0_7] : memref<128x2xf32, #tpu.memory_space<vmem>>, vector<128x2xf32>
    %cst_8 = arith.constant dense<0.000000e+00> : vector<16x2xf32>
    %10 = tpu.matmul %8, %9, %cst_8 {dimension_numbers = #tpu.dot_dimension_numbers<[1], [0], [0], [1], [0, 0, 1, 1], [], []>} : vector<16x128xf32>, vector<128x2xf32>, vector<16x2xf32> -> vector<16x2xf32>
    %c0_9 = arith.constant 0 : index
    %c0_10 = arith.constant 0 : index
    %11 = vector.load %arg5[%c0_9, %c0_10] : memref<1x2xf32, #tpu.memory_space<vmem>>, vector<1x2xf32>
    %12 = vector.broadcast %11 : vector<1x2xf32> to vector<16x2xf32>
    %13 = arith.addf %10, %12 : vector<16x2xf32>
    %c0_11 = arith.constant 0 : index
    %c0_12 = arith.constant 0 : index
    %14 = vector.load %arg6[%c0_11, %c0_12] : memref<16x2xf32, #tpu.memory_space<vmem>>, vector<16x2xf32>
    tpu.vector_store %arg6[%c0_11, %c0_12], %13 {strides = array<i32>} : memref<16x2xf32, #tpu.memory_space<vmem>>, vector<16x2xf32>,
    return
  }
  func.func @transform_0(%arg0: i32) -> (i32, i32) {
    %c0_i32 = arith.constant 0 : i32
    %c0_i32_0 = arith.constant 0 : i32
    return %arg0, %c0_i32 : i32, i32
  }
  func.func @transform_1(%arg0: i32) -> (i32, i32) {
    %c0_i32 = arith.constant 0 : i32
    %c0_i32_0 = arith.constant 0 : i32
    %c0_i32_1 = arith.constant 0 : i32
    return %c0_i32, %c0_i32_0 : i32, i32
  }
  func.func @transform_2(%arg0: i32) -> (i32, i32) {
    %c0_i32 = arith.constant 0 : i32
    %c0_i32_0 = arith.constant 0 : i32
    %c0_i32_1 = arith.constant 0 : i32
    return %c0_i32, %c0_i32_0 : i32, i32
  }
  func.func @transform_3(%arg0: i32) -> (i32, i32) {
    %c0_i32 = arith.constant 0 : i32
    %c0_i32_0 = arith.constant 0 : i32
    %c0_i32_1 = arith.constant 0 : i32
    return %c0_i32, %c0_i32_0 : i32, i32
  }
  func.func @transform_4(%arg0: i32) -> (i32, i32) {
    %c0_i32 = arith.constant 0 : i32
    %c0_i32_0 = arith.constant 0 : i32
    %c0_i32_1 = arith.constant 0 : i32
    return %c0_i32, %c0_i32_0 : i32, i32
  }
  func.func @transform_5(%arg0: i32) -> (i32, i32) {
    %c0_i32 = arith.constant 0 : i32
    %c0_i32_0 = arith.constant 0 : i32
    return %arg0, %c0_i32 : i32, i32
  }
}

</mosaic_0001>

<llo_original>
// kernel: tpu_custom_call.1
$region0: #{tpu_custom_call.1}
  #allocation0 [shape = 'u32[]', space=smem, size = 0x4, offset = 0x4, fixed_abs, tag = 'smem constant byte address 0x4 - core index']
  #allocation1 [shape = 'u32[72,128]{1,0:T(1,128)}', space=vmem, size = 0x9000, scoped, tag = 'internal scratch']
  %s0 = inlined_call_operand.hbm [shape: f32[16,1728], index: 0, kind: input, shape index: {}]
  %s1 = inlined_call_operand.hbm [shape: bf16[1728,128], index: 1, kind: input, shape index: {}]
  %s2 = inlined_call_operand.vmem [shape: f32[1,128], index: 2, kind: input, shape index: {}]
  %s3 = inlined_call_operand.vmem [shape: f32[128,2], index: 3, kind: input, shape index: {}]
  %s4 = inlined_call_operand.vmem [shape: f32[1,2], index: 4, kind: input, shape index: {}]
  %s5 = inlined_call_operand.vmem [shape: f32[16,2], index: 5, kind: output, shape index: {}]
  %s6 = sld [smem:[#allocation0]]
  $region38: #{tpu_custom_call.1} parent=0
    _
  %s8 = ssub.s32 1, %s6
  %s9 = scalar_select 0, %s8, %s6
  $region1: #{tpu_custom_call.1} parent=0
    #allocation2 [shape = 'u8[114688]{0}', space=vmem, size = 0x1c000, scoped, tag = 'input window, operand 0, single buffered']
    #allocation3 [shape = 's32[1]{0}', space=sflag, size = 0x4, scoped, tag = 'scoped memory for tpu_custom_call.1']
    #allocation4 [shape = 'u8[442368]{0}', space=vmem, size = 0x6c000, scoped, tag = 'input window, operand 1, single buffered']
    #allocation5 [shape = 's32[1]{0}', space=sflag, size = 0x4, scoped, tag = 'scoped memory for tpu_custom_call.1']
    %10 = vsyncpa [#allocation3], 0
    %11 = vsyncpa [#allocation5], 0
    // Predicated region
    $region2: #{tpu_custom_call.1} parent=1 // pred_check
      _
    $region3: #{tpu_custom_call.1} parent=1 // pred_check_branch
      %13 = sbr.rel (0) target = $region5
    $region4: #{tpu_custom_call.1} parent=1 // pred_region
      %15 = vsyncadd [#allocation3], 0
      %s16 = sshll.u32 %s0, 4
      %s17 = int_to_ptr.hbm [resolvable:$true] %s16
      %s18 = sshll.u32 [#allocation2], 4
      %s19 = int_to_ptr.vmem [resolvable:$true] %s18
      %24 = dma.hbm_to_vmem [thread:$0]  %s17, 3584, %s19, [#allocation3], 1792, 1792, 112
    $region5: #{tpu_custom_call.1} parent=1 // pred_fallthru
      _
    // Predicated region
    $region6: #{tpu_custom_call.1} parent=1 // pred_check
      _
    $region7: #{tpu_custom_call.1} parent=1 // pred_check_branch
      %26 = sbr.rel (0) target = $region9
    $region8: #{tpu_custom_call.1} parent=1 // pred_region
      %28 = vsyncadd [#allocation5], 0
      %s29 = sshll.u32 %s1, 4
      %s30 = int_to_ptr.hbm [resolvable:$true] %s29
      %s31 = sshll.u32 [#allocation4], 4
      %s32 = int_to_ptr.vmem [resolvable:$true] %s31
      %37 = dma.hbm_to_vmem [thread:$0]  %s30, 13824, %s32, [#allocation5], 64, 64, 4
    $region9: #{tpu_custom_call.1} parent=1 // pred_fallthru
      _
    // Predicated region
    $region10: #{tpu_custom_call.1} parent=1 // pred_check
      _
    $region11: #{tpu_custom_call.1} parent=1 // pred_check_branch
      %39 = sbr.rel (0) target = $region13
    $region12: #{tpu_custom_call.1} parent=1 // pred_region
      _
    $region13: #{tpu_custom_call.1} parent=1 // pred_fallthru
      _
    // Predicated region
    $region14: #{tpu_custom_call.1} parent=1 // pred_check
      _
    $region15: #{tpu_custom_call.1} parent=1 // pred_check_branch
      %41 = sbr.rel (0) target = $region17
    $region16: #{tpu_custom_call.1} parent=1 // pred_region
      _
    $region17: #{tpu_custom_call.1} parent=1 // pred_fallthru
      _
    // Predicated region
    $region18: #{tpu_custom_call.1} parent=1 // pred_check
      _
    $region19: #{tpu_custom_call.1} parent=1 // pred_check_branch
      %43 = sbr.rel (0) target = $region21
    $region20: #{tpu_custom_call.1} parent=1 // pred_region
      _
    $region21: #{tpu_custom_call.1} parent=1 // pred_fallthru
      _
    // Predicated region
    $region22: #{tpu_custom_call.1} parent=1 // pred_check
      _
    $region23: #{tpu_custom_call.1} parent=1 // pred_check_branch
      %45 = sbr.rel (0) target = $region25
    $region24: #{tpu_custom_call.1} parent=1 // pred_region
      %47 = dma.done [#allocation3], 3584
    $region25: #{tpu_custom_call.1} parent=1 // pred_fallthru
      _
    // Predicated region
    $region26: #{tpu_custom_call.1} parent=1 // pred_check
      _
    $region27: #{tpu_custom_call.1} parent=1 // pred_check_branch
      %49 = sbr.rel (0) target = $region29
    $region28: #{tpu_custom_call.1} parent=1 // pred_region
      %51 = dma.done [#allocation5], 13824
    $region29: #{tpu_custom_call.1} parent=1 // pred_fallthru
      _
    %v53 = vld [vmem:[#allocation2] sm:$0xff]
    %v54 = vld [vmem:[#allocation2 + $0x8] sm:$0xff]
    %v55 = vld [vmem:[#allocation2 + $0x10] sm:$0xff]
    %v56 = vld [vmem:[#allocation2 + $0x18] sm:$0xff]
    %v57 = vld [vmem:[#allocation2 + $0x20] sm:$0xff]
    %v58 = vld [vmem:[#allocation2 + $0x28] sm:$0xff]
    %v59 = vld [vmem:[#allocation2 + $0x30] sm:$0xff]
    %v60 = vld [vmem:[#allocation2 + $0x38] sm:$0xff]
    %v61 = vld [vmem:[#allocation2 + $0x40] sm:$0xff]
    %v62 = vld [vmem:[#allocation2 + $0x48] sm:$0xff]
    %v63 = vld [vmem:[#allocation2 + $0x50] sm:$0xff]
    %v64 = vld [vmem:[#allocation2 + $0x58] sm:$0xff]
    %v65 = vld [vmem:[#allocation2 + $0x60] sm:$0xff]
    %v66 = vld [vmem:[#allocation2 + $0x68] sm:$0xff]
    %v67 = vld [vmem:[#allocation2 + $0x70] sm:$0xff]
    %v68 = vld [vmem:[#allocation2 + $0x78] sm:$0xff]
    %v69 = vld [vmem:[#allocation2 + $0x80] sm:$0xff]
    %v70 = vld [vmem:[#allocation2 + $0x88] sm:$0xff]
    %v71 = vld [vmem:[#allocation2 + $0x90] sm:$0xff]
    %v72 = vld [vmem:[#allocation2 + $0x98] sm:$0xff]
    %v73 = vld [vmem:[#allocation2 + $0xa0] sm:$0xff]
    %v74 = vld [vmem:[#allocation2 + $0xa8] sm:$0xff]
    %v75 = vld [vmem:[#allocation2 + $0xb0] sm:$0xff]
    %v76 = vld [vmem:[#allocation2 + $0xb8] sm:$0xff]
    %v77 = vld [vmem:[#allocation2 + $0xc0] sm:$0xff]
    %v78 = vld [vmem:[#allocation2 + $0xc8] sm:$0xff]
    %v79 = vld [vmem:[#allocation2 + $0xd0] sm:$0xff]
    %v80 = vld [vmem:[#allocation2 + $0xd8] sm:$0xff]
    %v81 = vpack.c.bf16 %v67, %v53
    %v82 = vpack.c.bf16 %v68, %v54
    %v83 = vpack.c.bf16 %v69, %v55
    %v84 = vpack.c.bf16 %v70, %v56
    %v85 = vpack.c.bf16 %v71, %v57
    %v86 = vpack.c.bf16 %v72, %v58
    %v87 = vpack.c.bf16 %v73, %v59
    %v88 = vpack.c.bf16 %v74, %v60
    %v89 = vpack.c.bf16 %v75, %v61
    %v90 = vpack.c.bf16 %v76, %v62
    %v91 = vpack.c.bf16 %v77, %v63
    %v92 = vpack.c.bf16 %v78, %v64
    %v93 = vpack.c.bf16 %v79, %v65
    %v94 = vpack.c.bf16 %v80, %v66
    %v95 = vld [vmem:[#allocation4] sm:$0xf]
    %v96 = vld [vmem:[#allocation4 + $0x4] sm:$0xf]
    %v97 = vld [vmem:[#allocation4 + $0x8] sm:$0xf]
    %v98 = vld [vmem:[#allocation4 + $0xc] sm:$0xf]
    %v99 = vld [vmem:[#allocation4 + $0x10] sm:$0xf]
    %v100 = vld [vmem:[#allocation4 + $0x14] sm:$0xf]
    %v101 = vld [vmem:[#allocation4 + $0x18] sm:$0xf]
    %v102 = vld [vmem:[#allocation4 + $0x1c] sm:$0xf]
    %v103 = vld [vmem:[#allocation4 + $0x20] sm:$0xf]
    %v104 = vld [vmem:[#allocation4 + $0x24] sm:$0xf]
    %v105 = vld [vmem:[#allocation4 + $0x28] sm:$0xf]
    %v106 = vld [vmem:[#allocation4 + $0x2c] sm:$0xf]
    %v107 = vld [vmem:[#allocation4 + $0x30] sm:$0xf]
    %v108 = vld [vmem:[#allocation4 + $0x34] sm:$0xf]
    %v109 = vld [vmem:[#allocation4 + $0x38] sm:$0xf]
    %v110 = vld [vmem:[#allocation4 + $0x3c] sm:$0xf]
    %v111 = vld [vmem:[#allocation4 + $0x40] sm:$0xf]
    %v112 = vld [vmem:[#allocation4 + $0x44] sm:$0xf]
    %v113 = vld [vmem:[#allocation4 + $0x48] sm:$0xf]
    %v114 = vld [vmem:[#allocation4 + $0x4c] sm:$0xf]
    %v115 = vld [vmem:[#allocation4 + $0x50] sm:$0xf]
    %v116 = vld [vmem:[#allocation4 + $0x54] sm:$0xf]
    %v117 = vld [vmem:[#allocation4 + $0x58] sm:$0xf]
    %v118 = vld [vmem:[#allocation4 + $0x5c] sm:$0xf]
    %v119 = vld [vmem:[#allocation4 + $0x60] sm:$0xf]
    %v120 = vld [vmem:[#allocation4 + $0x64] sm:$0xf]
    %v121 = vld [vmem:[#allocation4 + $0x68] sm:$0xf]
    %v122 = vld [vmem:[#allocation4 + $0x6c] sm:$0xf]
    %v123 = vld [vmem:[#allocation4 + $0x70] sm:$0xf]
    %v124 = vld [vmem:[#allocation4 + $0x74] sm:$0xf]
    %v125 = vld [vmem:[#allocation4 + $0x78] sm:$0xf]
    %v126 = vld [vmem:[#allocation4 + $0x7c] sm:$0xf]
    %v127 = vld [vmem:[#allocation4 + $0x80] sm:$0xf]
    %v128 = vld [vmem:[#allocation4 + $0x84] sm:$0xf]
    %v129 = vld [vmem:[#allocation4 + $0x88] sm:$0xf]
    %v130 = vld [vmem:[#allocation4 + $0x8c] sm:$0xf]
    %v131 = vld [vmem:[#allocation4 + $0x90] sm:$0xf]
    %v132 = vld [vmem:[#allocation4 + $0x94] sm:$0xf]
    %v133 = vld [vmem:[#allocation4 + $0x98] sm:$0xf]
    %v134 = vld [vmem:[#allocation4 + $0x9c] sm:$0xf]
    %v135 = vld [vmem:[#allocation4 + $0xa0] sm:$0xf]
    %v136 = vld [vmem:[#allocation4 + $0xa4] sm:$0xf]
    %v137 = vld [vmem:[#allocation4 + $0xa8] sm:$0xf]
    %v138 = vld [vmem:[#allocation4 + $0xac] sm:$0xf]
    %v139 = vld [vmem:[#allocation4 + $0xb0] sm:$0xf]
    %v140 = vld [vmem:[#allocation4 + $0xb4] sm:$0xf]
    %v141 = vld [vmem:[#allocation4 + $0xb8] sm:$0xf]
    %v142 = vld [vmem:[#allocation4 + $0xbc] sm:$0xf]
    %v143 = vld [vmem:[#allocation4 + $0xc0] sm:$0xf]
    %v144 = vld [vmem:[#allocation4 + $0xc4] sm:$0xf]
    %v145 = vld [vmem:[#allocation4 + $0xc8] sm:$0xf]
    %v146 = vld [vmem:[#allocation4 + $0xcc] sm:$0xf]
    %v147 = vld [vmem:[#allocation4 + $0xd0] sm:$0xf]
    %v148 = vld [vmem:[#allocation4 + $0xd4] sm:$0xf]
    %v149 = vld [vmem:[#allocation4 + $0xd8] sm:$0xf]
    %v150 = vld [vmem:[#allocation4 + $0xdc] sm:$0xf]
    %v151 = vld [vmem:[#allocation4 + $0xe0] sm:$0xf]
    %v152 = vld [vmem:[#allocation4 + $0xe4] sm:$0xf]
    %v153 = vld [vmem:[#allocation4 + $0xe8] sm:$0xf]
    %v154 = vld [vmem:[#allocation4 + $0xec] sm:$0xf]
    %v155 = vld [vmem:[#allocation4 + $0xf0] sm:$0xf]
    %v156 = vld [vmem:[#allocation4 + $0xf4] sm:$0xf]
    %v157 = vld [vmem:[#allocation4 + $0xf8] sm:$0xf]
    %v158 = vld [vmem:[#allocation4 + $0xfc] sm:$0xf]
    %v159 = vld [vmem:[#allocation4 + $0x100] sm:$0xf]
    %v160 = vld [vmem:[#allocation4 + $0x104] sm:$0xf]
    %v161 = vld [vmem:[#allocation4 + $0x108] sm:$0xf]
    %v162 = vld [vmem:[#allocation4 + $0x10c] sm:$0xf]
    %v163 = vld [vmem:[#allocation4 + $0x110] sm:$0xf]
    %v164 = vld [vmem:[#allocation4 + $0x114] sm:$0xf]
    %v165 = vld [vmem:[#allocation4 + $0x118] sm:$0xf]
    %v166 = vld [vmem:[#allocation4 + $0x11c] sm:$0xf]
    %v167 = vld [vmem:[#allocation4 + $0x120] sm:$0xf]
    %v168 = vld [vmem:[#allocation4 + $0x124] sm:$0xf]
    %v169 = vld [vmem:[#allocation4 + $0x128] sm:$0xf]
    %v170 = vld [vmem:[#allocation4 + $0x12c] sm:$0xf]
    %v171 = vld [vmem:[#allocation4 + $0x130] sm:$0xf]
    %v172 = vld [vmem:[#allocation4 + $0x134] sm:$0xf]
    %v173 = vld [vmem:[#allocation4 + $0x138] sm:$0xf]
    %v174 = vld [vmem:[#allocation4 + $0x13c] sm:$0xf]
    %v175 = vld [vmem:[#allocation4 + $0x140] sm:$0xf]
    %v176 = vld [vmem:[#allocation4 + $0x144] sm:$0xf]
    %v177 = vld [vmem:[#allocation4 + $0x148] sm:$0xf]
    %v178 = vld [vmem:[#allocation4 + $0x14c] sm:$0xf]
    %v179 = vld [vmem:[#allocation4 + $0x150] sm:$0xf]
    %v180 = vld [vmem:[#allocation4 + $0x154] sm:$0xf]
    %v181 = vld [vmem:[#allocation4 + $0x158] sm:$0xf]
    %v182 = vld [vmem:[#allocation4 + $0x15c] sm:$0xf]
    %v183 = vld [vmem:[#allocation4 + $0x160] sm:$0xf]
    %v184 = vld [vmem:[#allocation4 + $0x164] sm:$0xf]
    %v185 = vld [vmem:[#allocation4 + $0x168] sm:$0xf]
    %v186 = vld [vmem:[#allocation4 + $0x16c] sm:$0xf]
    %v187 = vld [vmem:[#allocation4 + $0x170] sm:$0xf]
    %v188 = vld [vmem:[#allocation4 + $0x174] sm:$0xf]
    %v189 = vld [vmem:[#allocation4 + $0x178] sm:$0xf]
    %v190 = vld [vmem:[#allocation4 + $0x17c] sm:$0xf]
    %v191 = vld [vmem:[#allocation4 + $0x180] sm:$0xf]
    %v192 = vld [vmem:[#allocation4 + $0x184] sm:$0xf]
    %v193 = vld [vmem:[#allocation4 + $0x188] sm:$0xf]
    %v194 = vld [vmem:[#allocation4 + $0x18c] sm:$0xf]
    %v195 = vld [vmem:[#allocation4 + $0x190] sm:$0xf]
    %v196 = vld [vmem:[#allocation4 + $0x194] sm:$0xf]
    %v197 = vld [vmem:[#allocation4 + $0x198] sm:$0xf]
    %v198 = vld [vmem:[#allocation4 + $0x19c] sm:$0xf]
    %v199 = vld [vmem:[#allocation4 + $0x1a0] sm:$0xf]
    %v200 = vld [vmem:[#allocation4 + $0x1a4] sm:$0xf]
    %v201 = vld [vmem:[#allocation4 + $0x1a8] sm:$0xf]
    %v202 = vld [vmem:[#allocation4 + $0x1ac] sm:$0xf]
    %v203 = vld [vmem:[#allocation4 + $0x1b0] sm:$0xf]
    %v204 = vld [vmem:[#allocation4 + $0x1b4] sm:$0xf]
    %v205 = vld [vmem:[#allocation4 + $0x1b8] sm:$0xf]
    %v206 = vld [vmem:[#allocation4 + $0x1bc] sm:$0xf]
    %v207 = vld [vmem:[#allocation4 + $0x1c0] sm:$0xf]
    %v208 = vld [vmem:[#allocation4 + $0x1c4] sm:$0xf]
    %v209 = vld [vmem:[#allocation4 + $0x1c8] sm:$0xf]
    %v210 = vld [vmem:[#allocation4 + $0x1cc] sm:$0xf]
    %v211 = vld [vmem:[#allocation4 + $0x1d0] sm:$0xf]
    %v212 = vld [vmem:[#allocation4 + $0x1d4] sm:$0xf]
    %v213 = vld [vmem:[#allocation4 + $0x1d8] sm:$0xf]
    %v214 = vld [vmem:[#allocation4 + $0x1dc] sm:$0xf]
    %v215 = vld [vmem:[#allocation4 + $0x1e0] sm:$0xf]
    %v216 = vld [vmem:[#allocation4 + $0x1e4] sm:$0xf]
    %v217 = vld [vmem:[#allocation4 + $0x1e8] sm:$0xf]
    %v218 = vld [vmem:[#allocation4 + $0x1ec] sm:$0xf]
    %v219 = vld [vmem:[#allocation4 + $0x1f0] sm:$0xf]
    %v220 = vld [vmem:[#allocation4 + $0x1f4] sm:$0xf]
    %v221 = vld [vmem:[#allocation4 + $0x1f8] sm:$0xf]
    %v222 = vld [vmem:[#allocation4 + $0x1fc] sm:$0xf]
    %v223 = vld [vmem:[#allocation4 + $0x200] sm:$0xf]
    %v224 = vld [vmem:[#allocation4 + $0x204] sm:$0xf]
    %v225 = vld [vmem:[#allocation4 + $0x208] sm:$0xf]
    %v226 = vld [vmem:[#allocation4 + $0x20c] sm:$0xf]
    %v227 = vld [vmem:[#allocation4 + $0x210] sm:$0xf]
    %v228 = vld [vmem:[#allocation4 + $0x214] sm:$0xf]
    %v229 = vld [vmem:[#allocation4 + $0x218] sm:$0xf]
    %v230 = vld [vmem:[#allocation4 + $0x21c] sm:$0xf]
    %v231 = vld [vmem:[#allocation4 + $0x220] sm:$0xf]
    %v232 = vld [vmem:[#allocation4 + $0x224] sm:$0xf]
    %v233 = vld [vmem:[#allocation4 + $0x228] sm:$0xf]
    %v234 = vld [vmem:[#allocation4 + $0x22c] sm:$0xf]
    %v235 = vld [vmem:[#allocation4 + $0x230] sm:$0xf]
    %v236 = vld [vmem:[#allocation4 + $0x234] sm:$0xf]
    %v237 = vld [vmem:[#allocation4 + $0x238] sm:$0xf]
    %v238 = vld [vmem:[#allocation4 + $0x23c] sm:$0xf]
    %v239 = vld [vmem:[#allocation4 + $0x240] sm:$0xf]
    %v240 = vld [vmem:[#allocation4 + $0x244] sm:$0xf]
    %v241 = vld [vmem:[#allocation4 + $0x248] sm:$0xf]
    %v242 = vld [vmem:[#allocation4 + $0x24c] sm:$0xf]
    %v243 = vld [vmem:[#allocation4 + $0x250] sm:$0xf]
    %v244 = vld [vmem:[#allocation4 + $0x254] sm:$0xf]
    %v245 = vld [vmem:[#allocation4 + $0x258] sm:$0xf]
    %v246 = vld [vmem:[#allocation4 + $0x25c] sm:$0xf]
    %v247 = vld [vmem:[#allocation4 + $0x260] sm:$0xf]
    %v248 = vld [vmem:[#allocation4 + $0x264] sm:$0xf]
    %v249 = vld [vmem:[#allocation4 + $0x268] sm:$0xf]
    %v250 = vld [vmem:[#allocation4 + $0x26c] sm:$0xf]
    %v251 = vld [vmem:[#allocation4 + $0x270] sm:$0xf]
    %v252 = vld [vmem:[#allocation4 + $0x274] sm:$0xf]
    %v253 = vld [vmem:[#allocation4 + $0x278] sm:$0xf]
    %v254 = vld [vmem:[#allocation4 + $0x27c] sm:$0xf]
    %v255 = vld [vmem:[#allocation4 + $0x280] sm:$0xf]
    %v256 = vld [vmem:[#allocation4 + $0x284] sm:$0xf]
    %v257 = vld [vmem:[#allocation4 + $0x288] sm:$0xf]
    %v258 = vld [vmem:[#allocation4 + $0x28c] sm:$0xf]
    %v259 = vld [vmem:[#allocation4 + $0x290] sm:$0xf]
    %v260 = vld [vmem:[#allocation4 + $0x294] sm:$0xf]
    %v261 = vld [vmem:[#allocation4 + $0x298] sm:$0xf]
    %v262 = vld [vmem:[#allocation4 + $0x29c] sm:$0xf]
    %v263 = vld [vmem:[#allocation4 + $0x2a0] sm:$0xf]
    %v264 = vld [vmem:[#allocation4 + $0x2a4] sm:$0xf]
    %v265 = vld [vmem:[#allocation4 + $0x2a8] sm:$0xf]
    %v266 = vld [vmem:[#allocation4 + $0x2ac] sm:$0xf]
    %v267 = vld [vmem:[#allocation4 + $0x2b0] sm:$0xf]
    %v268 = vld [vmem:[#allocation4 + $0x2b4] sm:$0xf]
    %v269 = vld [vmem:[#allocation4 + $0x2b8] sm:$0xf]
    %v270 = vld [vmem:[#allocation4 + $0x2bc] sm:$0xf]
    %v271 = vld [vmem:[#allocation4 + $0x2c0] sm:$0xf]
    %v272 = vld [vmem:[#allocation4 + $0x2c4] sm:$0xf]
    %v273 = vld [vmem:[#allocation4 + $0x2c8] sm:$0xf]
    %v274 = vld [vmem:[#allocation4 + $0x2cc] sm:$0xf]
    %v275 = vld [vmem:[#allocation4 + $0x2d0] sm:$0xf]
    %v276 = vld [vmem:[#allocation4 + $0x2d4] sm:$0xf]
    %v277 = vld [vmem:[#allocation4 + $0x2d8] sm:$0xf]
    %v278 = vld [vmem:[#allocation4 + $0x2dc] sm:$0xf]
    %v279 = vld [vmem:[#allocation4 + $0x2e0] sm:$0xf]
    %v280 = vld [vmem:[#allocation4 + $0x2e4] sm:$0xf]
    %v281 = vld [vmem:[#allocation4 + $0x2e8] sm:$0xf]
    %v282 = vld [vmem:[#allocation4 + $0x2ec] sm:$0xf]
    %v283 = vld [vmem:[#allocation4 + $0x2f0] sm:$0xf]
    %v284 = vld [vmem:[#allocation4 + $0x2f4] sm:$0xf]
    %v285 = vld [vmem:[#allocation4 + $0x2f8] sm:$0xf]
    %v286 = vld [vmem:[#allocation4 + $0x2fc] sm:$0xf]
    %v287 = vld [vmem:[#allocation4 + $0x300] sm:$0xf]
    %v288 = vld [vmem:[#allocation4 + $0x304] sm:$0xf]
    %v289 = vld [vmem:[#allocation4 + $0x308] sm:$0xf]
    %v290 = vld [vmem:[#allocation4 + $0x30c] sm:$0xf]
    %v291 = vld [vmem:[#allocation4 + $0x310] sm:$0xf]
    %v292 = vld [vmem:[#allocation4 + $0x314] sm:$0xf]
    %v293 = vld [vmem:[#allocation4 + $0x318] sm:$0xf]
    %v294 = vld [vmem:[#allocation4 + $0x31c] sm:$0xf]
    %v295 = vld [vmem:[#allocation4 + $0x320] sm:$0xf]
    %v296 = vld [vmem:[#allocation4 + $0x324] sm:$0xf]
    %v297 = vld [vmem:[#allocation4 + $0x328] sm:$0xf]
    %v298 = vld [vmem:[#allocation4 + $0x32c] sm:$0xf]
    %v299 = vld [vmem:[#allocation4 + $0x330] sm:$0xf]
    %v300 = vld [vmem:[#allocation4 + $0x334] sm:$0xf]
    %v301 = vld [vmem:[#allocation4 + $0x338] sm:$0xf]
    %v302 = vld [vmem:[#allocation4 + $0x33c] sm:$0xf]
    %v303 = vld [vmem:[#allocation4 + $0x340] sm:$0xf]
    %v304 = vld [vmem:[#allocation4 + $0x344] sm:$0xf]
    %v305 = vld [vmem:[#allocation4 + $0x348] sm:$0xf]
    %v306 = vld [vmem:[#allocation4 + $0x34c] sm:$0xf]
    %v307 = vld [vmem:[#allocation4 + $0x350] sm:$0xf]
    %v308 = vld [vmem:[#allocation4 + $0x354] sm:$0xf]
    %v309 = vld [vmem:[#allocation4 + $0x358] sm:$0xf]
    %v310 = vld [vmem:[#allocation4 + $0x35c] sm:$0xf]
    %v311 = vld [vmem:[%s2] sm:$0x1]
    %v313 = vperm.slane %v311, 0
    %v531 = vunpack.c.l.b16 %v95
    %v532 = vunpack.c.l.b16 %v96
    %v533 = vunpack.c.l.b16 %v97
    %v534 = vunpack.c.l.b16 %v98
    %v535 = vunpack.c.l.b16 %v99
    %v536 = vunpack.c.l.b16 %v100
    %v537 = vunpack.c.l.b16 %v101
    %v538 = vunpack.c.l.b16 %v102
    %v539 = vunpack.c.l.b16 %v103
    %v540 = vunpack.c.l.b16 %v104
    %v541 = vunpack.c.l.b16 %v105
    %v542 = vunpack.c.l.b16 %v106
    %v543 = vunpack.c.l.b16 %v107
    %v544 = vunpack.c.l.b16 %v108
    %v545 = vunpack.c.l.b16 %v109
    %v546 = vunpack.c.l.b16 %v110
    %v547 = vunpack.c.l.b16 %v111
    %v548 = vunpack.c.l.b16 %v112
    %v549 = vunpack.c.l.b16 %v113
    %v550 = vunpack.c.l.b16 %v114
    %v551 = vunpack.c.l.b16 %v115
    %v552 = vunpack.c.l.b16 %v116
    %v553 = vunpack.c.l.b16 %v117
    %v554 = vunpack.c.l.b16 %v118
    %v555 = vunpack.c.l.b16 %v119
    %v556 = vunpack.c.l.b16 %v120
    %v557 = vunpack.c.l.b16 %v121
    %v558 = vunpack.c.l.b16 %v122
    %v559 = vunpack.c.l.b16 %v123
    %v560 = vunpack.c.l.b16 %v124
    %v561 = vunpack.c.l.b16 %v125
    %v562 = vunpack.c.l.b16 %v126
    %v563 = vunpack.c.l.b16 %v127
    %v564 = vunpack.c.l.b16 %v128
    %v565 = vunpack.c.l.b16 %v129
    %v566 = vunpack.c.l.b16 %v130
    %v567 = vunpack.c.l.b16 %v131
    %v568 = vunpack.c.l.b16 %v132
    %v569 = vunpack.c.l.b16 %v133
    %v570 = vunpack.c.l.b16 %v134
    %v571 = vunpack.c.l.b16 %v135
    %v572 = vunpack.c.l.b16 %v136
    %v573 = vunpack.c.l.b16 %v137
    %v574 = vunpack.c.l.b16 %v138
    %v575 = vunpack.c.l.b16 %v139
    %v576 = vunpack.c.l.b16 %v140
    %v577 = vunpack.c.l.b16 %v141
    %v578 = vunpack.c.l.b16 %v142
    %v579 = vunpack.c.l.b16 %v143
    %v580 = vunpack.c.l.b16 %v144
    %v581 = vunpack.c.l.b16 %v145
    %v582 = vunpack.c.l.b16 %v146
    %v583 = vunpack.c.l.b16 %v147
    %v584 = vunpack.c.l.b16 %v148
    %v585 = vunpack.c.l.b16 %v149
    %v586 = vunpack.c.l.b16 %v150
    %v587 = vunpack.c.l.b16 %v151
    %v588 = vunpack.c.l.b16 %v152
    %v589 = vunpack.c.l.b16 %v153
    %v590 = vunpack.c.l.b16 %v154
    %v591 = vunpack.c.l.b16 %v155
    %v592 = vunpack.c.l.b16 %v156
    %v593 = vunpack.c.l.b16 %v157
    %v594 = vunpack.c.l.b16 %v158
    %v595 = vunpack.c.l.b16 %v159
    %v596 = vunpack.c.l.b16 %v160
    %v597 = vunpack.c.l.b16 %v161
    %v598 = vunpack.c.l.b16 %v162
    %v599 = vunpack.c.l.b16 %v163
    %v600 = vunpack.c.l.b16 %v164
    %v601 = vunpack.c.l.b16 %v165
    %v602 = vunpack.c.l.b16 %v166
    %v603 = vunpack.c.l.b16 %v167
    %v604 = vunpack.c.l.b16 %v168
    %v605 = vunpack.c.l.b16 %v169
    %v606 = vunpack.c.l.b16 %v170
    %v607 = vunpack.c.l.b16 %v171
    %v608 = vunpack.c.l.b16 %v172
    %v609 = vunpack.c.l.b16 %v173
    %v610 = vunpack.c.l.b16 %v174
    %v611 = vunpack.c.l.b16 %v175
    %v612 = vunpack.c.l.b16 %v176
    %v613 = vunpack.c.l.b16 %v177
    %v614 = vunpack.c.l.b16 %v178
    %v615 = vunpack.c.l.b16 %v179
    %v616 = vunpack.c.l.b16 %v180
    %v617 = vunpack.c.l.b16 %v181
    %v618 = vunpack.c.l.b16 %v182
    %v619 = vunpack.c.l.b16 %v183
    %v620 = vunpack.c.l.b16 %v184
    %v621 = vunpack.c.l.b16 %v185
    %v622 = vunpack.c.l.b16 %v186
    %v623 = vunpack.c.l.b16 %v187
    %v624 = vunpack.c.l.b16 %v188
    %v625 = vunpack.c.l.b16 %v189
    %v626 = vunpack.c.l.b16 %v190
    %v627 = vunpack.c.l.b16 %v191
    %v628 = vunpack.c.l.b16 %v192
    %v629 = vunpack.c.l.b16 %v193
    %v630 = vunpack.c.l.b16 %v194
    %v631 = vunpack.c.l.b16 %v195
    %v632 = vunpack.c.l.b16 %v196
    %v633 = vunpack.c.l.b16 %v197
    %v634 = vunpack.c.l.b16 %v198
    %v635 = vunpack.c.l.b16 %v199
    %v636 = vunpack.c.l.b16 %v200
    %v637 = vunpack.c.l.b16 %v201
    %v638 = vunpack.c.l.b16 %v202
    %v639 = vunpack.c.l.b16 %v203
    %v640 = vunpack.c.l.b16 %v204
    %v641 = vunpack.c.l.b16 %v205
    %v642 = vunpack.c.l.b16 %v206
    %v643 = vunpack.c.l.b16 %v207
    %v644 = vunpack.c.l.b16 %v208
    %v645 = vunpack.c.l.b16 %v209
    %v646 = vunpack.c.l.b16 %v210
    %v647 = vunpack.c.l.b16 %v211
    %v648 = vunpack.c.l.b16 %v212
    %v649 = vunpack.c.l.b16 %v213
    %v650 = vunpack.c.l.b16 %v214
    %v651 = vunpack.c.l.b16 %v215
    %v652 = vunpack.c.l.b16 %v216
    %v653 = vunpack.c.l.b16 %v217
    %v654 = vunpack.c.l.b16 %v218
    %v655 = vunpack.c.l.b16 %v219
    %v656 = vunpack.c.l.b16 %v220
    %v657 = vunpack.c.l.b16 %v221
    %v658 = vunpack.c.l.b16 %v222
    %v659 = vunpack.c.l.b16 %v223
    %v660 = vunpack.c.l.b16 %v224
    %v661 = vunpack.c.l.b16 %v225
    %v662 = vunpack.c.l.b16 %v226
    %v663 = vunpack.c.l.b16 %v227
    %v664 = vunpack.c.l.b16 %v228
    %v665 = vunpack.c.l.b16 %v229
    %v666 = vunpack.c.l.b16 %v230
    %v667 = vunpack.c.l.b16 %v231
    %v668 = vunpack.c.l.b16 %v232
    %v669 = vunpack.c.l.b16 %v233
    %v670 = vunpack.c.l.b16 %v234
    %v671 = vunpack.c.l.b16 %v235
    %v672 = vunpack.c.l.b16 %v236
    %v673 = vunpack.c.l.b16 %v237
    %v674 = vunpack.c.l.b16 %v238
    %v675 = vunpack.c.l.b16 %v239
    %v676 = vunpack.c.l.b16 %v240
    %v677 = vunpack.c.l.b16 %v241
    %v678 = vunpack.c.l.b16 %v242
    %v679 = vunpack.c.l.b16 %v243
    %v680 = vunpack.c.l.b16 %v244
    %v681 = vunpack.c.l.b16 %v245
    %v682 = vunpack.c.l.b16 %v246
    %v683 = vunpack.c.l.b16 %v247
    %v684 = vunpack.c.l.b16 %v248
    %v685 = vunpack.c.l.b16 %v249
    %v686 = vunpack.c.l.b16 %v250
    %v687 = vunpack.c.l.b16 %v251
    %v688 = vunpack.c.l.b16 %v252
    %v689 = vunpack.c.l.b16 %v253
    %v690 = vunpack.c.l.b16 %v254
    %v691 = vunpack.c.l.b16 %v255
    %v692 = vunpack.c.l.b16 %v256
    %v693 = vunpack.c.l.b16 %v257
    %v694 = vunpack.c.l.b16 %v258
    %v695 = vunpack.c.l.b16 %v259
    %v696 = vunpack.c.l.b16 %v260
    %v697 = vunpack.c.l.b16 %v261
    %v698 = vunpack.c.l.b16 %v262
    %v699 = vunpack.c.l.b16 %v263
    %v700 = vunpack.c.l.b16 %v264
    %v701 = vunpack.c.l.b16 %v265
    %v702 = vunpack.c.l.b16 %v266
    %v703 = vunpack.c.l.b16 %v267
    %v704 = vunpack.c.l.b16 %v268
    %v705 = vunpack.c.l.b16 %v269
    %v706 = vunpack.c.l.b16 %v270
    %v707 = vunpack.c.l.b16 %v271
    %v708 = vunpack.c.l.b16 %v272
    %v709 = vunpack.c.l.b16 %v273
    %v710 = vunpack.c.l.b16 %v274
    %v711 = vunpack.c.l.b16 %v275
    %v712 = vunpack.c.l.b16 %v276
    %v713 = vunpack.c.l.b16 %v277
    %v714 = vunpack.c.l.b16 %v278
    %v715 = vunpack.c.l.b16 %v279
    %v716 = vunpack.c.l.b16 %v280
    %v717 = vunpack.c.l.b16 %v281
    %v718 = vunpack.c.l.b16 %v282
    %v719 = vunpack.c.l.b16 %v283
    %v720 = vunpack.c.l.b16 %v284
    %v721 = vunpack.c.l.b16 %v285
    %v722 = vunpack.c.l.b16 %v286
    %v723 = vunpack.c.l.b16 %v287
    %v724 = vunpack.c.l.b16 %v288
    %v725 = vunpack.c.l.b16 %v289
    %v726 = vunpack.c.l.b16 %v290
    %v727 = vunpack.c.l.b16 %v291
    %v728 = vunpack.c.l.b16 %v292
    %v729 = vunpack.c.l.b16 %v293
    %v730 = vunpack.c.l.b16 %v294
    %v731 = vunpack.c.l.b16 %v295
    %v732 = vunpack.c.l.b16 %v296
    %v733 = vunpack.c.l.b16 %v297
    %v734 = vunpack.c.l.b16 %v298
    %v735 = vunpack.c.l.b16 %v299
    %v736 = vunpack.c.l.b16 %v300
    %v737 = vunpack.c.l.b16 %v301
    %v738 = vunpack.c.l.b16 %v302
    %v739 = vunpack.c.l.b16 %v303
    %v740 = vunpack.c.l.b16 %v304
    %v741 = vunpack.c.l.b16 %v305
    %v742 = vunpack.c.l.b16 %v306
    %v743 = vunpack.c.l.b16 %v307
    %v744 = vunpack.c.l.b16 %v308
    %v745 = vunpack.c.l.b16 %v309
    %v746 = vunpack.c.l.b16 %v310
    %v747 = vpack.c.b16 %v532, %v531
    %v748 = vpack.c.b16 %v534, %v533
    %v749 = vpack.c.b16 %v536, %v535
    %v750 = vpack.c.b16 %v538, %v537
    %v751 = vpack.c.b16 %v540, %v539
    %v752 = vpack.c.b16 %v542, %v541
    %v753 = vpack.c.b16 %v544, %v543
    %v754 = vpack.c.b16 %v546, %v545
    %v755 = vpack.c.b16 %v548, %v547
    %v756 = vpack.c.b16 %v550, %v549
    %v757 = vpack.c.b16 %v552, %v551
    %v758 = vpack.c.b16 %v554, %v553
    %v759 = vpack.c.b16 %v556, %v555
    %v760 = vpack.c.b16 %v558, %v557
    %v761 = vpack.c.b16 %v560, %v559
    %v762 = vpack.c.b16 %v562, %v561
    %v763 = vpack.c.b16 %v564, %v563
    %v764 = vpack.c.b16 %v566, %v565
    %v765 = vpack.c.b16 %v568, %v567
    %v766 = vpack.c.b16 %v570, %v569
    %v767 = vpack.c.b16 %v572, %v571
    %v768 = vpack.c.b16 %v574, %v573
    %v769 = vpack.c.b16 %v576, %v575
    %v770 = vpack.c.b16 %v578, %v577
    %v771 = vpack.c.b16 %v580, %v579
    %v772 = vpack.c.b16 %v582, %v581
    %v773 = vpack.c.b16 %v584, %v583
    %v774 = vpack.c.b16 %v586, %v585
    %v775 = vpack.c.b16 %v588, %v587
    %v776 = vpack.c.b16 %v590, %v589
    %v777 = vpack.c.b16 %v592, %v591
    %v778 = vpack.c.b16 %v594, %v593
    %v779 = vpack.c.b16 %v596, %v595
    %v780 = vpack.c.b16 %v598, %v597
    %v781 = vpack.c.b16 %v600, %v599
    %v782 = vpack.c.b16 %v602, %v601
    %v783 = vpack.c.b16 %v604, %v603
    %v784 = vpack.c.b16 %v606, %v605
    %v785 = vpack.c.b16 %v608, %v607
    %v786 = vpack.c.b16 %v610, %v609
    %v787 = vpack.c.b16 %v612, %v611
    %v788 = vpack.c.b16 %v614, %v613
    %v789 = vpack.c.b16 %v616, %v615
    %v790 = vpack.c.b16 %v618, %v617
    %v791 = vpack.c.b16 %v620, %v619
    %v792 = vpack.c.b16 %v622, %v621
    %v793 = vpack.c.b16 %v624, %v623
    %v794 = vpack.c.b16 %v626, %v625
    %v795 = vpack.c.b16 %v628, %v627
    %v796 = vpack.c.b16 %v630, %v629
    %v797 = vpack.c.b16 %v632, %v631
    %v798 = vpack.c.b16 %v634, %v633
    %v799 = vpack.c.b16 %v636, %v635
    %v800 = vpack.c.b16 %v638, %v637
    %v801 = vpack.c.b16 %v640, %v639
    %v802 = vpack.c.b16 %v642, %v641
    %v803 = vpack.c.b16 %v644, %v643
    %v804 = vpack.c.b16 %v646, %v645
    %v805 = vpack.c.b16 %v648, %v647
    %v806 = vpack.c.b16 %v650, %v649
    %v807 = vpack.c.b16 %v652, %v651
    %v808 = vpack.c.b16 %v654, %v653
    %v809 = vpack.c.b16 %v656, %v655
    %v810 = vpack.c.b16 %v658, %v657
    %v811 = vpack.c.b16 %v660, %v659
    %v812 = vpack.c.b16 %v662, %v661
    %v813 = vpack.c.b16 %v664, %v663
    %v814 = vpack.c.b16 %v666, %v665
    %v815 = vpack.c.b16 %v668, %v667
    %v816 = vpack.c.b16 %v670, %v669
    %v817 = vpack.c.b16 %v672, %v671
    %v818 = vpack.c.b16 %v674, %v673
    %v819 = vpack.c.b16 %v676, %v675
    %v820 = vpack.c.b16 %v678, %v677
    %v821 = vpack.c.b16 %v680, %v679
    %v822 = vpack.c.b16 %v682, %v681
    %v823 = vpack.c.b16 %v684, %v683
    %v824 = vpack.c.b16 %v686, %v685
    %v825 = vpack.c.b16 %v688, %v687
    %v826 = vpack.c.b16 %v690, %v689
    %v827 = vpack.c.b16 %v692, %v691
    %v828 = vpack.c.b16 %v694, %v693
    %v829 = vpack.c.b16 %v696, %v695
    %v830 = vpack.c.b16 %v698, %v697
    %v831 = vpack.c.b16 %v700, %v699
    %v832 = vpack.c.b16 %v702, %v701
    %v833 = vpack.c.b16 %v704, %v703
    %v834 = vpack.c.b16 %v706, %v705
    %v835 = vpack.c.b16 %v708, %v707
    %v836 = vpack.c.b16 %v710, %v709
    %v837 = vpack.c.b16 %v712, %v711
    %v838 = vpack.c.b16 %v714, %v713
    %v839 = vpack.c.b16 %v716, %v715
    %v840 = vpack.c.b16 %v718, %v717
    %v841 = vpack.c.b16 %v720, %v719
    %v842 = vpack.c.b16 %v722, %v721
    %v843 = vpack.c.b16 %v724, %v723
    %v844 = vpack.c.b16 %v726, %v725
    %v845 = vpack.c.b16 %v728, %v727
    %v846 = vpack.c.b16 %v730, %v729
    %v847 = vpack.c.b16 %v732, %v731
    %v848 = vpack.c.b16 %v734, %v733
    %v849 = vpack.c.b16 %v736, %v735
    %v850 = vpack.c.b16 %v738, %v737
    %v851 = vpack.c.b16 %v740, %v739
    %v852 = vpack.c.b16 %v742, %v741
    %v853 = vpack.c.b16 %v744, %v743
    %v854 = vpack.c.b16 %v746, %v745
    %vm963 = vcmask 523264
    %v965 = vsel %vm963, %v94, 0
    %967 = vmatpush.bf16.msra.mxu0 %v754
    %968 = vmatpush.bf16.msra.mxu0 %v753
    %969 = vmatpush.bf16.msra.mxu0 %v752
    %970 = vmatpush.bf16.msra.mxu0 %v751
    %971 = vmatpush.bf16.msra.mxu0 %v750
    %972 = vmatpush.bf16.msra.mxu0 %v749
    %973 = vmatpush.bf16.msra.mxu0 %v748
    %974 = vmatpush.bf16.msra.mxu0 %v747
    %975 = vmatmul.bf16.gmra.mxu0 %v81
    %v976 = vpop.f32.mrf.mxu0
    %v977 = vadd.f32 %v313, %v976
    %v978 = vpop.f32.mrf.mxu0
    %v979 = vadd.f32 %v313, %v978
    %980 = vdwg.mxu0
    %981 = vmatpush.bf16.msra.mxu0 %v762
    %982 = vmatpush.bf16.msra.mxu0 %v761
    %983 = vmatpush.bf16.msra.mxu0 %v760
    %984 = vmatpush.bf16.msra.mxu0 %v759
    %985 = vmatpush.bf16.msra.mxu0 %v758
    %986 = vmatpush.bf16.msra.mxu0 %v757
    %987 = vmatpush.bf16.msra.mxu0 %v756
    %988 = vmatpush.bf16.msra.mxu0 %v755
    %989 = vmatmul.bf16.gmra.mxu0 %v82
    %v990 = vpop.f32.mrf.mxu0
    %v991 = vadd.f32 %v977, %v990
    %v992 = vpop.f32.mrf.mxu0
    %v993 = vadd.f32 %v979, %v992
    %994 = vdwg.mxu0
    %995 = vmatpush.bf16.msra.mxu0 %v770
    %996 = vmatpush.bf16.msra.mxu0 %v769
    %997 = vmatpush.bf16.msra.mxu0 %v768
    %998 = vmatpush.bf16.msra.mxu0 %v767
    %999 = vmatpush.bf16.msra.mxu0 %v766
    %1000 = vmatpush.bf16.msra.mxu0 %v765
    %1001 = vmatpush.bf16.msra.mxu0 %v764
    %1002 = vmatpush.bf16.msra.mxu0 %v763
    %1003 = vmatmul.bf16.gmra.mxu0 %v83
    %v1004 = vpop.f32.mrf.mxu0
    %v1005 = vadd.f32 %v991, %v1004
    %v1006 = vpop.f32.mrf.mxu0
    %v1007 = vadd.f32 %v993, %v1006
    %1008 = vdwg.mxu0
    %1009 = vmatpush.bf16.msra.mxu0 %v778
    %1010 = vmatpush.bf16.msra.mxu0 %v777
    %1011 = vmatpush.bf16.msra.mxu0 %v776
    %1012 = vmatpush.bf16.msra.mxu0 %v775
    %1013 = vmatpush.bf16.msra.mxu0 %v774
    %1014 = vmatpush.bf16.msra.mxu0 %v773
    %1015 = vmatpush.bf16.msra.mxu0 %v772
    %1016 = vmatpush.bf16.msra.mxu0 %v771
    %1017 = vmatmul.bf16.gmra.mxu0 %v84
    %v1018 = vpop.f32.mrf.mxu0
    %v1019 = vadd.f32 %v1005, %v1018
    %v1020 = vpop.f32.mrf.mxu0
    %v1021 = vadd.f32 %v1007, %v1020
    %1022 = vdwg.mxu0
    %1023 = vmatpush.bf16.msra.mxu0 %v786
    %1024 = vmatpush.bf16.msra.mxu0 %v785
    %1025 = vmatpush.bf16.msra.mxu0 %v784
    %1026 = vmatpush.bf16.msra.mxu0 %v783
    %1027 = vmatpush.bf16.msra.mxu0 %v782
    %1028 = vmatpush.bf16.msra.mxu0 %v781
    %1029 = vmatpush.bf16.msra.mxu0 %v780
    %1030 = vmatpush.bf16.msra.mxu0 %v779
    %1031 = vmatmul.bf16.gmra.mxu0 %v85
    %v1032 = vpop.f32.mrf.mxu0
    %v1033 = vadd.f32 %v1019, %v1032
    %v1034 = vpop.f32.mrf.mxu0
    %v1035 = vadd.f32 %v1021, %v1034
    %1036 = vdwg.mxu0
    %1037 = vmatpush.bf16.msra.mxu0 %v794
    %1038 = vmatpush.bf16.msra.mxu0 %v793
    %1039 = vmatpush.bf16.msra.mxu0 %v792
    %1040 = vmatpush.bf16.msra.mxu0 %v791
    %1041 = vmatpush.bf16.msra.mxu0 %v790
    %1042 = vmatpush.bf16.msra.mxu0 %v789
    %1043 = vmatpush.bf16.msra.mxu0 %v788
    %1044 = vmatpush.bf16.msra.mxu0 %v787
    %1045 = vmatmul.bf16.gmra.mxu0 %v86
    %v1046 = vpop.f32.mrf.mxu0
    %v1047 = vadd.f32 %v1033, %v1046
    %v1048 = vpop.f32.mrf.mxu0
    %v1049 = vadd.f32 %v1035, %v1048
    %1050 = vdwg.mxu0
    %1051 = vmatpush.bf16.msra.mxu0 %v802
    %1052 = vmatpush.bf16.msra.mxu0 %v801
    %1053 = vmatpush.bf16.msra.mxu0 %v800
    %1054 = vmatpush.bf16.msra.mxu0 %v799
    %1055 = vmatpush.bf16.msra.mxu0 %v798
    %1056 = vmatpush.bf16.msra.mxu0 %v797
    %1057 = vmatpush.bf16.msra.mxu0 %v796
    %1058 = vmatpush.bf16.msra.mxu0 %v795
    %1059 = vmatmul.bf16.gmra.mxu0 %v87
    %v1060 = vpop.f32.mrf.mxu0
    %v1061 = vadd.f32 %v1047, %v1060
    %v1062 = vpop.f32.mrf.mxu0
    %v1063 = vadd.f32 %v1049, %v1062
    %1064 = vdwg.mxu0
    %1065 = vmatpush.bf16.msra.mxu0 %v810
    %1066 = vmatpush.bf16.msra.mxu0 %v809
    %1067 = vmatpush.bf16.msra.mxu0 %v808
    %1068 = vmatpush.bf16.msra.mxu0 %v807
    %1069 = vmatpush.bf16.msra.mxu0 %v806
    %1070 = vmatpush.bf16.msra.mxu0 %v805
    %1071 = vmatpush.bf16.msra.mxu0 %v804
    %1072 = vmatpush.bf16.msra.mxu0 %v803
    %1073 = vmatmul.bf16.gmra.mxu0 %v88
    %v1074 = vpop.f32.mrf.mxu0
    %v1075 = vadd.f32 %v1061, %v1074
    %v1076 = vpop.f32.mrf.mxu0
    %v1077 = vadd.f32 %v1063, %v1076
    %1078 = vdwg.mxu0
    %1079 = vmatpush.bf16.msra.mxu0 %v818
    %1080 = vmatpush.bf16.msra.mxu0 %v817
    %1081 = vmatpush.bf16.msra.mxu0 %v816
    %1082 = vmatpush.bf16.msra.mxu0 %v815
    %1083 = vmatpush.bf16.msra.mxu0 %v814
    %1084 = vmatpush.bf16.msra.mxu0 %v813
    %1085 = vmatpush.bf16.msra.mxu0 %v812
    %1086 = vmatpush.bf16.msra.mxu0 %v811
    %1087 = vmatmul.bf16.gmra.mxu0 %v89
    %v1088 = vpop.f32.mrf.mxu0
    %v1089 = vadd.f32 %v1075, %v1088
    %v1090 = vpop.f32.mrf.mxu0
    %v1091 = vadd.f32 %v1077, %v1090
    %1092 = vdwg.mxu0
    %1093 = vmatpush.bf16.msra.mxu0 %v826
    %1094 = vmatpush.bf16.msra.mxu0 %v825
    %1095 = vmatpush.bf16.msra.mxu0 %v824
    %1096 = vmatpush.bf16.msra.mxu0 %v823
    %1097 = vmatpush.bf16.msra.mxu0 %v822
    %1098 = vmatpush.bf16.msra.mxu0 %v821
    %1099 = vmatpush.bf16.msra.mxu0 %v820
    %1100 = vmatpush.bf16.msra.mxu0 %v819
    %1101 = vmatmul.bf16.gmra.mxu0 %v90
    %v1102 = vpop.f32.mrf.mxu0
    %v1103 = vadd.f32 %v1089, %v1102
    %v1104 = vpop.f32.mrf.mxu0
    %v1105 = vadd.f32 %v1091, %v1104
    %1106 = vdwg.mxu0
    %1107 = vmatpush.bf16.msra.mxu0 %v834
    %1108 = vmatpush.bf16.msra.mxu0 %v833
    %1109 = vmatpush.bf16.msra.mxu0 %v832
    %1110 = vmatpush.bf16.msra.mxu0 %v831
    %1111 = vmatpush.bf16.msra.mxu0 %v830
    %1112 = vmatpush.bf16.msra.mxu0 %v829
    %1113 = vmatpush.bf16.msra.mxu0 %v828
    %1114 = vmatpush.bf16.msra.mxu0 %v827
    %1115 = vmatmul.bf16.gmra.mxu0 %v91
    %v1116 = vpop.f32.mrf.mxu0
    %v1117 = vadd.f32 %v1103, %v1116
    %v1118 = vpop.f32.mrf.mxu0
    %v1119 = vadd.f32 %v1105, %v1118
    %1120 = vdwg.mxu0
    %1121 = vmatpush.bf16.msra.mxu0 %v842
    %1122 = vmatpush.bf16.msra.mxu0 %v841
    %1123 = vmatpush.bf16.msra.mxu0 %v840
    %1124 = vmatpush.bf16.msra.mxu0 %v839
    %1125 = vmatpush.bf16.msra.mxu0 %v838
    %1126 = vmatpush.bf16.msra.mxu0 %v837
    %1127 = vmatpush.bf16.msra.mxu0 %v836
    %1128 = vmatpush.bf16.msra.mxu0 %v835
    %1129 = vmatmul.bf16.gmra.mxu0 %v92
    %v1130 = vpop.f32.mrf.mxu0
    %v1131 = vadd.f32 %v1117, %v1130
    %v1132 = vpop.f32.mrf.mxu0
    %v1133 = vadd.f32 %v1119, %v1132
    %1134 = vdwg.mxu0
    %1135 = vmatpush.bf16.msra.mxu0 %v850
    %1136 = vmatpush.bf16.msra.mxu0 %v849
    %1137 = vmatpush.bf16.msra.mxu0 %v848
    %1138 = vmatpush.bf16.msra.mxu0 %v847
    %1139 = vmatpush.bf16.msra.mxu0 %v846
    %1140 = vmatpush.bf16.msra.mxu0 %v845
    %1141 = vmatpush.bf16.msra.mxu0 %v844
    %1142 = vmatpush.bf16.msra.mxu0 %v843
    %1143 = vmatmul.bf16.gmra.mxu0 %v93
    %v1144 = vpop.f32.mrf.mxu0
    %v1145 = vadd.f32 %v1131, %v1144
    %v1146 = vpop.f32.mrf.mxu0
    %v1147 = vadd.f32 %v1133, %v1146
    %1148 = vdwg.mxu0
    %1149 = vmatpush.bf16.msra.mxu0 0
    %1150 = vmatpush.bf16.msra.mxu0 0
    %1151 = vmatpush.bf16.msra.mxu0 0
    %1152 = vmatpush.bf16.msra.mxu0 0
    %1153 = vmatpush.bf16.msra.mxu0 %v854
    %1154 = vmatpush.bf16.msra.mxu0 %v853
    %1155 = vmatpush.bf16.msra.mxu0 %v852
    %1156 = vmatpush.bf16.msra.mxu0 %v851
    %1157 = vmatmul.bf16.gmra.mxu0 %v965
    %v1158 = vpop.f32.mrf.mxu0
    %v1159 = vadd.f32 %v1145, %v1158
    %v1160 = vpop.f32.mrf.mxu0
    %v1161 = vadd.f32 %v1147, %v1160
    %1162 = vdwg.mxu0
    %v1163 = vmax.f32 %v1159, 0.0
    %v1164 = vmax.f32 %v1161, 0.0
    %v1165 = vld [vmem:[%s3] sm:$0xff]
    %v1166 = vld [vmem:[%s3 + $0x8] sm:$0xff]
    %v1167 = vld [vmem:[%s3 + $0x10] sm:$0xff]
    %v1168 = vld [vmem:[%s3 + $0x18] sm:$0xff]
    %v1169 = vld [vmem:[%s3 + $0x20] sm:$0xff]
    %v1170 = vld [vmem:[%s3 + $0x28] sm:$0xff]
    %v1171 = vld [vmem:[%s3 + $0x30] sm:$0xff]
    %v1172 = vld [vmem:[%s3 + $0x38] sm:$0xff]
    %v1173 = vld [vmem:[%s3 + $0x40] sm:$0xff]
    %v1174 = vld [vmem:[%s3 + $0x48] sm:$0xff]
    %v1175 = vld [vmem:[%s3 + $0x50] sm:$0xff]
    %v1176 = vld [vmem:[%s3 + $0x58] sm:$0xff]
    %v1177 = vld [vmem:[%s3 + $0x60] sm:$0xff]
    %v1178 = vld [vmem:[%s3 + $0x68] sm:$0xff]
    %v1179 = vld [vmem:[%s3 + $0x70] sm:$0xff]
    %v1180 = vld [vmem:[%s3 + $0x78] sm:$0xff]
    %v1181 = vld [vmem:[%s4] sm:$0x1]
    %v1183 = vperm.slane %v1181, 0
    %1185 = vmatpush.msra.mxu0 %v1180
    %1186 = vmatpush.msra.mxu0 %v1179
    %1187 = vmatpush.msra.mxu0 %v1178
    %1188 = vmatpush.msra.mxu0 %v1177
    %1189 = vmatpush.msra.mxu0 %v1176
    %1190 = vmatpush.msra.mxu0 %v1175
    %1191 = vmatpush.msra.mxu0 %v1174
    %1192 = vmatpush.msra.mxu0 %v1173
    %1193 = vmatpush.msra.mxu0 %v1172
    %1194 = vmatpush.msra.mxu0 %v1171
    %1195 = vmatpush.msra.mxu0 %v1170
    %1196 = vmatpush.msra.mxu0 %v1169
    %1197 = vmatpush.msra.mxu0 %v1168
    %1198 = vmatpush.msra.mxu0 %v1167
    %1199 = vmatpush.msra.mxu0 %v1166
    %1200 = vmatpush.msra.mxu0 %v1165
    %1201 = vmatmul.f32.gmra.mxu0 %v1163
    %v1202 = vpop.f32.mrf.mxu0
    %v1203 = vadd.f32 %v1183, %v1202
    %1204 = vmatmul.f32.gmra.mxu0 %v1164
    %v1205 = vpop.f32.mrf.mxu0
    %v1206 = vadd.f32 %v1183, %v1205
    %1207 = vdwg.mxu0
    %vm1208 = vcmask 15360
    %1209 = vst.msk [vmem:[%s5] sm:$0xff] %vm1208, %v1203
    %1210 = vst.msk [vmem:[%s5 + $0x8] sm:$0xff] %vm1208, %v1206
    // Predicated region
    $region30: #{tpu_custom_call.1} parent=1 // pred_check
      _
    $region31: #{tpu_custom_call.1} parent=1 // pred_check_branch
      %1212 = sbr.rel (0) target = $region33
    $region32: #{tpu_custom_call.1} parent=1 // pred_region
      _
    $region33: #{tpu_custom_call.1} parent=1 // pred_fallthru
      _
    // Predicated region
    $region34: #{tpu_custom_call.1} parent=1 // pred_check
      _
    $region35: #{tpu_custom_call.1} parent=1 // pred_check_branch
      %1214 = sbr.rel (0) target = $region37
    $region36: #{tpu_custom_call.1} parent=1 // pred_region
      _
    $region37: #{tpu_custom_call.1} parent=1 // pred_fallthru
      _
    %1215 = vsyncpa [#allocation3], 1
    %1216 = vsyncpa [#allocation5], 1

</llo_original>
